<compile_context>
chip_gen: v7x
topology: tpu7x:2x2x1
jax: 0.10.0
libtpu: 0.0.40
codegen_flags: <defaults>
</compile_context>

<pallas_src>
import jax
import jax.numpy as jnp
from jax.experimental import pallas as pl
from jax.experimental.pallas import tpu as pltpu


def _binary_classifier_kernel(params_ref, xt_ref, o_ref):
    # params_ref: SMEM (3,) f32 = [w0, w1, b]
    # xt_ref:     VMEM (in_f=2, T) f32, lane-dense (batch on the lane axis)
    # o_ref:      VMEM (out_f=1, T) f32
    w0 = params_ref[0]
    w1 = params_ref[1]
    b = params_ref[2]
    x0 = xt_ref[0:1, :]          # (1, T)
    x1 = xt_ref[1:2, :]          # (1, T)
    # Pure VPU: 2 mul + 2 add per vreg, sigmoid on the EUP slot.
    o_ref[...] = jax.nn.sigmoid(x0 * w0 + x1 * w1 + b)


def _round_up(n, m):
    return ((n + m - 1) // m) * m


def binary_classifier_forward(x, weight, bias, *, lane_tile=8192):
    """Forward pass of BinaryClassifier.

    Args:
      x:      [B, 2] float32
      weight: [1, 2] float32  (PyTorch nn.Linear layout: [out_features, in_features])
      bias:   [1]    float32
      lane_tile: per-grid-step batch tile (lanes); multiple of 128.
    Returns:
      [B, 1] float32, sigmoid(x @ weight.T + bias)
    """
    B, in_f = x.shape
    out_f = weight.shape[0]
    assert in_f == 2 and out_f == 1, "BinaryClassifier is Linear(2, 1)"
    assert lane_tile % 128 == 0

    # Lane-dense transposed layout: [in_f, B].
    xt = x.astype(jnp.float32).T

    # Tile the batch along the lane axis; pad to a tile multiple.
    tile = min(lane_tile, _round_up(B, 128))
    b_pad = _round_up(B, tile)
    if b_pad != B:
        xt = jnp.pad(xt, ((0, 0), (0, b_pad - B)))
    num_blocks = b_pad // tile

    # Scalar parameters -> SMEM via scalar prefetch: [w0, w1, b].
    params = jnp.concatenate(
        [weight.reshape(-1).astype(jnp.float32), bias.reshape(-1).astype(jnp.float32)]
    )

    out_t = pl.pallas_call(
        _binary_classifier_kernel,
        out_shape=jax.ShapeDtypeStruct((out_f, b_pad), jnp.float32),
        grid_spec=pltpu.PrefetchScalarGridSpec(
            num_scalar_prefetch=1,
            grid=(num_blocks,),
            in_specs=[
                # x tile: (2, tile); second-to-last dim equals full array dim.
                pl.BlockSpec((in_f, tile), lambda i, params: (0, i)),
            ],
            out_specs=pl.BlockSpec((out_f, tile), lambda i, params: (0, i)),
        ),
        compiler_params=pltpu.CompilerParams(
            dimension_semantics=("parallel",),
        ),
    )(params, xt)

    # Back to PyTorch layout [B, 1]; drop padding rows.
    return out_t.T[:B, :]


if __name__ == "__main__":
    key = jax.random.PRNGKey(0)
    kx, kw, kb, kx2 = jax.random.split(key, 4)

    # Module implies: input features = 2, output = 1. Small batch = 8.
    B, IN_F, OUT_F = 8, 2, 1
    x = jax.random.normal(kx, (B, IN_F), dtype=jnp.float32)

    # Deterministic parameter init (mimics nn.Linear uniform(-1/sqrt(in), 1/sqrt(in))).
    bound = 1.0 / jnp.sqrt(jnp.float32(IN_F))
    weight = jax.random.uniform(kw, (OUT_F, IN_F), minval=-bound, maxval=bound,
                                dtype=jnp.float32)
    bias = jax.random.uniform(kb, (OUT_F,), minval=-bound, maxval=bound,
                              dtype=jnp.float32)

    out = binary_classifier_forward(x, weight, bias)
    out = jax.block_until_ready(out)

    ref = jax.nn.sigmoid(x @ weight.T + bias)
    assert out.shape == (B, OUT_F)
    assert jnp.allclose(out, ref, atol=1e-6, rtol=1e-6)

    # Second check: non-tile-aligned batch exercising a multi-block grid + padding.
    B2 = 300
    x2 = jax.random.normal(kx2, (B2, IN_F), dtype=jnp.float32)
    out2 = binary_classifier_forward(x2, weight, bias, lane_tile=128)
    out2 = jax.block_until_ready(out2)
    ref2 = jax.nn.sigmoid(x2 @ weight.T + bias)
    assert out2.shape == (B2, OUT_F)
    assert jnp.allclose(out2, ref2, atol=1e-6, rtol=1e-6)

    print("KERNEL_OK")
</pallas_src>

<mosaic_0001>
module attributes {stable_mosaic.version = 11 : i64} {
  func.func @_binary_classifier_kernel(%arg0: i32, %arg1: memref<3xf32, #tpu.memory_space<smem>>, %arg2: memref<2x128xf32, #tpu.memory_space<vmem>>, %arg3: memref<1x128xf32, #tpu.memory_space<vmem>>) attributes {dimension_semantics = [#tpu.dimension_semantics<parallel>], iteration_bounds = array<i64: 1>, scalar_prefetch = 1 : i64, scratch_operands = 0 : i64, tpu.core_type = #tpu.core_type<tc>, window_params = [{transform_indices = @transform_0, window_bounds = array<i64: 2, 128>}, {transform_indices = @transform_1, window_bounds = array<i64: 1, 128>}]} {
    %c0 = arith.constant 0 : index
    %0 = memref.load %arg1[%c0] : memref<3xf32, #tpu.memory_space<smem>>
    %c1 = arith.constant 1 : index
    %1 = memref.load %arg1[%c1] : memref<3xf32, #tpu.memory_space<smem>>
    %c2 = arith.constant 2 : index
    %2 = memref.load %arg1[%c2] : memref<3xf32, #tpu.memory_space<smem>>
    %c0_0 = arith.constant 0 : index
    %c0_1 = arith.constant 0 : index
    %3 = vector.load %arg2[%c0_0, %c0_1] : memref<2x128xf32, #tpu.memory_space<vmem>>, vector<1x128xf32>
    %c1_2 = arith.constant 1 : index
    %c0_3 = arith.constant 0 : index
    %4 = vector.load %arg2[%c1_2, %c0_3] : memref<2x128xf32, #tpu.memory_space<vmem>>, vector<1x128xf32>
    %5 = vector.broadcast %0 : f32 to vector<1x128xf32>
    %6 = arith.mulf %3, %5 : vector<1x128xf32>
    %7 = vector.broadcast %1 : f32 to vector<1x128xf32>
    %8 = arith.mulf %4, %7 : vector<1x128xf32>
    %9 = arith.addf %6, %8 : vector<1x128xf32>
    %10 = vector.broadcast %2 : f32 to vector<1x128xf32>
    %11 = arith.addf %9, %10 : vector<1x128xf32>
    %12 = arith.negf %11 : vector<1x128xf32>
    %13 = math.exp %12 : vector<1x128xf32>
    %cst = arith.constant 1.000000e+00 : f32
    %14 = vector.broadcast %cst : f32 to vector<1x128xf32>
    %15 = arith.addf %14, %13 : vector<1x128xf32>
    %16 = arith.divf %14, %15 : vector<1x128xf32>
    %c0_4 = arith.constant 0 : index
    %c0_5 = arith.constant 0 : index
    %17 = vector.load %arg3[%c0_4, %c0_5] : memref<1x128xf32, #tpu.memory_space<vmem>>, vector<1x128xf32>
    tpu.vector_store %arg3[%c0_4, %c0_5], %16 {strides = array<i32>} : memref<1x128xf32, #tpu.memory_space<vmem>>, vector<1x128xf32>,
    return
  }
  func.func @transform_0(%arg0: i32, %arg1: memref<3xf32, #tpu.memory_space<smem>>) -> (i32, i32) {
    %c0_i32 = arith.constant 0 : i32
    %c0_i32_0 = arith.constant 0 : i32
    return %c0_i32, %arg0 : i32, i32
  }
  func.func @transform_1(%arg0: i32, %arg1: memref<3xf32, #tpu.memory_space<smem>>) -> (i32, i32) {
    %c0_i32 = arith.constant 0 : i32
    %c0_i32_0 = arith.constant 0 : i32
    return %c0_i32, %arg0 : i32, i32
  }
}

</mosaic_0001>

<llo_original>
// kernel: tpu_custom_call.1
$region0: #{tpu_custom_call.1}
  #allocation0 [shape = 'u32[]', space=smem, size = 0x4, offset = 0x4, fixed_abs, tag = 'smem constant byte address 0x4 - core index']
  #allocation1 [shape = 'u32[144,128]{1,0:T(1,128)}', space=vmem, size = 0x12000, scoped, tag = 'internal scratch']
  #allocation2 [shape = 's32[1]{0}', space=sflag, size = 0x4, scoped, tag = 'scoped memory for tpu_custom_call.1']
  #allocation3 [shape = 'u8[512]{0}', space=smem, size = 0x200, scoped, tag = 'prefetched SMEM operand 0']
  %s0 = inlined_call_operand.hbm [shape: f32[3], index: 0, kind: input, shape index: {}]
  %s1 = inlined_call_operand.vmem [shape: f32[2,128], index: 1, kind: input, shape index: {}]
  %s2 = inlined_call_operand.hbm [shape: f32[1,128], index: 2, kind: output, shape index: {}]
  %s3 = sld [smem:[#allocation0]]
  $region14: #{tpu_custom_call.1} parent=0
    _
  %s5 = ssub.s32 1, %s3
  %s6 = scalar_select 0, %s5, %s3
  %8 = dma.hbm_to_smem %s0, 16, [#allocation3], [#allocation2]
  %9 = dma.done [#allocation2], 16
  %10 = sfence
  $region1: #{tpu_custom_call.1} parent=0
    #allocation4 [shape = 'u8[512]{0}', space=vmem, size = 0x400, scoped, tag = 'output window, operand 0, single buffered']
    #allocation5 [shape = 's32[1]{0}', space=sflag, size = 0x4, scoped, tag = 'scoped memory for tpu_custom_call.1']
    %11 = vsyncpa [#allocation5], 0
    // Predicated region
    $region2: #{tpu_custom_call.1} parent=1 // pred_check
      _
    $region3: #{tpu_custom_call.1} parent=1 // pred_check_branch
      %13 = sbr.rel (0) target = $region5
    $region4: #{tpu_custom_call.1} parent=1 // pred_region
      _
    $region5: #{tpu_custom_call.1} parent=1 // pred_fallthru
      _
    %s14 = sld [smem:[#allocation3]]
    %s15 = sld [smem:[#allocation3 + $0x1]]
    %s16 = sld [smem:[#allocation3 + $0x2]]
    %v17 = vld [vmem:[%s1] sm:$0x1]
    %v18 = vld [vmem:[%s1 + $0x1] sm:$0x1]
    %v19 = vstv %s14
    %v20 = vmul.f32 %v17, %v19
    %v21 = vstv %s15
    %v22 = vmul.f32 %v18, %v21
    %v23 = vadd.f32 %v20, %v22
    %v24 = vstv %s16
    %v25 = vadd.f32 %v23, %v24
    %v26 = vxor.u32 %v25, 2147483648
    %v27 = vmul.f32 %v26, 1.442695
    %v28 = vpow.pop %v27
    %v29 = vadd.f32 %v28, 1.0
    %v30 = vrcp.pop %v29
    %v31 = vmul.f32 1.0, %v30
    %32 = vst [vmem:[#allocation4] sm:$0x1] %v31
    // Predicated region
    $region6: #{tpu_custom_call.1} parent=1 // pred_check
      _
    $region7: #{tpu_custom_call.1} parent=1 // pred_check_branch
      %34 = sbr.rel (0) target = $region9
    $region8: #{tpu_custom_call.1} parent=1 // pred_region
      %s36 = ssub.s32 16, 16
      %37 = vsyncadd [#allocation5], %s36
      %s39 = sshll.u32 [#allocation4], 4
      %s40 = int_to_ptr.vmem [resolvable:$true] %s39
      %42 = dma.vmem_to_hbm [thread:$0]  %s40, 16, %s2, [#allocation5]
    $region9: #{tpu_custom_call.1} parent=1 // pred_fallthru
      _
    // Predicated region
    $region10: #{tpu_custom_call.1} parent=1 // pred_check
      _
    $region11: #{tpu_custom_call.1} parent=1 // pred_check_branch
      %44 = sbr.rel (0) target = $region13
    $region12: #{tpu_custom_call.1} parent=1 // pred_region
      %45 = dma.done [#allocation5], 16
    $region13: #{tpu_custom_call.1} parent=1 // pred_fallthru
      _
    %46 = vsyncpa [#allocation5], 1

</llo_original>
